<compile_context>
chip_gen: v7x
topology: tpu7x:2x2x1
jax: 0.10.0
libtpu: 0.0.40
codegen_flags: <defaults>
</compile_context>

<pallas_src>
import functools

import jax
import jax.numpy as jnp
from jax.experimental import pallas as pl
from jax.experimental.pallas import tpu as pltpu

_NEG_PAD = -1e30   # padding value for the lane-padded vocab columns
_LANE = 128
_SUBLANE = 8


def _round_up(x, m):
    return ((x + m - 1) // m) * m


def _bigram_loss_kernel(idx_ref, tgt_ref, emb_ref, logits_ref, loss_ref, *, n_valid):
    """One grid step = one tile of TILE_N tokens. emb_ref is the full table."""
    tile_n, vp = logits_ref.shape
    step = pl.program_id(0)

    ids = idx_ref[...]        # (tile_n, 1) int32
    tgts = tgt_ref[...]       # (tile_n, 1) int32
    table = emb_ref[...]      # (vp, vp) f32, resident across the grid

    # Single lane-iota per tile, reused for the one-hot gather AND the
    # target-logit pick (broadcast_in_dim is not CSE'd by JAX).
    col = jax.lax.broadcasted_iota(jnp.int32, (tile_n, vp), 1)

    # Row gather as a one-hot matmul on the MXU.  Exactly one 1.0 per row
    # (0/1 are exact in bf16); HIGHEST precision keeps the gathered table
    # values at full f32 precision through the MXU passes.
    one_hot = (col == ids).astype(jnp.float32)                      # (tile_n, vp)
    logits = jnp.dot(one_hot, table,
                     precision=jax.lax.Precision.HIGHEST,
                     preferred_element_type=jnp.float32)            # (tile_n, vp)
    logits_ref[...] = logits                                        # dense (TILE_N,128) store

    # Stable per-row log-sum-exp over the padded vocab lanes (-1e30 padding
    # underflows to exactly 0 in exp, so padded lanes are inert).
    m = jnp.max(logits, axis=-1, keepdims=True)                                 # (tile_n, 1)
    lse = jnp.log(jnp.sum(jnp.exp(logits - m), axis=-1, keepdims=True)) + m     # (tile_n, 1)

    # Target logit via the same iota (no second one-hot matmul).
    tgt_logit = jnp.sum(jnp.where(col == tgts, logits, 0.0),
                        axis=-1, keepdims=True)                                 # (tile_n, 1)

    # Mask rows that are pure padding (global row index >= n_valid).
    row = step * tile_n + jax.lax.broadcasted_iota(jnp.int32, (tile_n, 1), 0)
    contrib = jnp.where(row < n_valid, lse - tgt_logit, 0.0)                    # (tile_n, 1)

    # Per-tile partial sum -> this tile's own output block.  No cross-step
    # accumulator, so the grid axis stays "parallel" (both v7x TensorCores).
    partial = jnp.sum(contrib, axis=0, keepdims=True)                           # (1, 1)
    loss_ref[...] = jnp.broadcast_to(partial[:, :, None], loss_ref.shape)


def _bigram_logits_kernel(idx_ref, emb_ref, logits_ref):
    """Inference path (targets is None): pure gather, no cross-entropy."""
    tile_n, vp = logits_ref.shape
    ids = idx_ref[...]                                              # (tile_n, 1)
    col = jax.lax.broadcasted_iota(jnp.int32, (tile_n, vp), 1)
    one_hot = (col == ids).astype(jnp.float32)
    logits_ref[...] = jnp.dot(one_hot, emb_ref[...],
                              precision=jax.lax.Precision.HIGHEST,
                              preferred_element_type=jnp.float32)


def bigram_forward(idx, emb, targets=None, *, tile_n=None):
    """Forward pass of BigramLanguageModel.

    idx:     (B, T) int token ids
    emb:     (V, V) float32 token-embedding table (row v = logits for token v)
    targets: optional (B, T) int token ids

    Returns (logits, loss):
      - targets is None: logits (B, T, V), loss None
      - else:            logits (B*T, V),  loss scalar
    (matches the PyTorch module's view semantics)
    """
    B, T = idx.shape
    V = emb.shape[0]
    N = B * T
    Vp = _round_up(V, _LANE)                 # lane-pad vocab (65 -> 128)

    # Tile size: full sublanes at minimum, up to 256 rows per MXU pass
    # (v6e/v7x 2x256^2 MXU sweet spot; still fine on v5e's 4x128^2).
    if tile_n is None:
        tile_n = min(256, _round_up(N, _SUBLANE))
    tile_n = max(_SUBLANE, _round_up(tile_n, _SUBLANE))
    num_tiles = pl.cdiv(N, tile_n)
    Np = num_tiles * tile_n

    # Pad: rows (never gathered, one-hot is 0 there) with 0, vocab columns
    # with -1e30 so they are inert in max / logsumexp.
    emb_p = jnp.pad(emb.astype(jnp.float32),
                    ((0, Vp - V), (0, Vp - V)),
                    mode="constant",
                    constant_values=((0.0, 0.0), (0.0, _NEG_PAD)))

    # Clamp ids so out-of-range tokens cannot select garbage rows (PyTorch
    # would raise; silent remapping is documented as a semantic divergence).
    idx_col = jnp.clip(idx.reshape(N, 1).astype(jnp.int32), 0, V - 1)
    idx_col = jnp.pad(idx_col, ((0, Np - N), (0, 0)))

    tok_spec = pl.BlockSpec((tile_n, 1), lambda i: (i, 0))
    emb_spec = pl.BlockSpec((Vp, Vp), lambda i: (0, 0))        # resident in VMEM
    logits_spec = pl.BlockSpec((tile_n, Vp), lambda i: (i, 0))

    if targets is None:
        logits_p = pl.pallas_call(
            _bigram_logits_kernel,
            out_shape=jax.ShapeDtypeStruct((Np, Vp), jnp.float32),
            grid_spec=pltpu.PrefetchScalarGridSpec(
                num_scalar_prefetch=0,
                grid=(num_tiles,),
                in_specs=[tok_spec, emb_spec],
                out_specs=logits_spec),
            compiler_params=pltpu.CompilerParams(
                dimension_semantics=("parallel",)),
            cost_estimate=pl.CostEstimate(
                flops=2 * Np * Vp * Vp,
                transcendentals=0,
                bytes_accessed=4 * (Np * Vp + Vp * Vp + Np)),
        )(idx_col, emb_p)
        # TODO(synk): downstream consumers that can mask padded columns should
        # take the (Np, Vp) slab directly and skip this unaligned-width copy.
        logits = logits_p[:N, :V]
        return logits.reshape(B, T, V), None

    tgt_col = jnp.clip(targets.reshape(N, 1).astype(jnp.int32), 0, V - 1)
    tgt_col = jnp.pad(tgt_col, ((0, Np - N), (0, 0)))

    # Per-tile partial-loss output: (num_tiles, 8, 128) so every block's last
    # two dims are a full (8, 128) vreg tile; wrapper reads [:, 0, 0].
    loss_spec = pl.BlockSpec((1, _SUBLANE, _LANE), lambda i: (i, 0, 0))

    logits_p, partials = pl.pallas_call(
        functools.partial(_bigram_loss_kernel, n_valid=N),
        out_shape=(
            jax.ShapeDtypeStruct((Np, Vp), jnp.float32),
            jax.ShapeDtypeStruct((num_tiles, _SUBLANE, _LANE), jnp.float32),
        ),
        grid_spec=pltpu.PrefetchScalarGridSpec(
            num_scalar_prefetch=0,
            grid=(num_tiles,),
            in_specs=[tok_spec, tok_spec, emb_spec],
            out_specs=(logits_spec, loss_spec)),
        compiler_params=pltpu.CompilerParams(
            dimension_semantics=("parallel",)),
        cost_estimate=pl.CostEstimate(
            flops=2 * Np * Vp * Vp,
            transcendentals=Np * Vp,
            bytes_accessed=4 * (Np * Vp + Vp * Vp + 2 * Np + num_tiles * _SUBLANE * _LANE)),
    )(idx_col, tgt_col, emb_p)

    loss = jnp.sum(partials[:, 0, 0]) * (1.0 / N)
    logits = logits_p[:N, :V]
    return logits, loss


def _reference_forward(idx, emb, targets):
    """Pure-JAX reference for correctness checking."""
    logits = emb[idx]                                  # (B, T, V)
    B, T, V = logits.shape
    lf = logits.reshape(B * T, V)
    tf = targets.reshape(B * T)
    lse = jax.nn.logsumexp(lf, axis=-1)
    tgt = jnp.take_along_axis(lf, tf[:, None], axis=-1)[:, 0]
    return lf, jnp.mean(lse - tgt)


if __name__ == "__main__":
    key = jax.random.PRNGKey(0)
    k_emb, k_idx, k_tgt = jax.random.split(key, 3)

    vocab_size = 65      # e.g. tiny-Shakespeare char vocab
    B, T = 2, 8

    # Deterministic parameter init (nn.Embedding default ~ N(0, 1)).
    emb = jax.random.normal(k_emb, (vocab_size, vocab_size), dtype=jnp.float32)
    idx = jax.random.randint(k_idx, (B, T), 0, vocab_size, dtype=jnp.int32)
    targets = jax.random.randint(k_tgt, (B, T), 0, vocab_size, dtype=jnp.int32)

    # Training-style call (with targets).
    logits, loss = bigram_forward(idx, emb, targets)
    jax.block_until_ready((logits, loss))
    assert logits.shape == (B * T, vocab_size)

    # Inference-style call (targets=None), like generate()'s inner call.
    logits_inf, loss_inf = bigram_forward(idx, emb, None)
    jax.block_until_ready(logits_inf)
    assert logits_inf.shape == (B, T, vocab_size) and loss_inf is None

    # Sanity check against pure-JAX reference.
    ref_logits, ref_loss = _reference_forward(idx, emb, targets)
    assert jnp.allclose(logits, ref_logits, atol=1e-4, rtol=1e-4), \
        float(jnp.max(jnp.abs(logits - ref_logits)))
    assert jnp.allclose(logits_inf.reshape(B * T, vocab_size), ref_logits,
                        atol=1e-4, rtol=1e-4)
    assert jnp.allclose(loss, ref_loss, atol=1e-4, rtol=1e-4), \
        (float(loss), float(ref_loss))

    print("KERNEL_OK")
</pallas_src>

<mosaic_0001>
module attributes {stable_mosaic.version = 11 : i64} {
  func.func @_bigram_loss_kernel(%arg0: i32, %arg1: memref<16x1xi32, #tpu.memory_space<vmem>>, %arg2: memref<16x1xi32, #tpu.memory_space<vmem>>, %arg3: memref<128x128xf32, #tpu.memory_space<vmem>>, %arg4: memref<16x128xf32, #tpu.memory_space<vmem>>, %arg5: memref<1x8x128xf32, #tpu.memory_space<vmem>>) attributes {dimension_semantics = [#tpu.dimension_semantics<parallel>], iteration_bounds = array<i64: 1>, scalar_prefetch = 0 : i64, scratch_operands = 0 : i64, tpu.core_type = #tpu.core_type<tc>, window_params = [{transform_indices = @transform_0, window_bounds = array<i64: 16, 1>}, {transform_indices = @transform_1, window_bounds = array<i64: 16, 1>}, {pipeline_mode = #tpu.pipeline_mode<synchronous>, transform_indices = @transform_2, window_bounds = array<i64: 128, 128>}, {transform_indices = @transform_3, window_bounds = array<i64: 16, 128>}, {transform_indices = @transform_4, window_bounds = array<i64: 1, 8, 128>}]} {
    %c0 = arith.constant 0 : index
    %c0_0 = arith.constant 0 : index
    %0 = vector.load %arg1[%c0, %c0_0] : memref<16x1xi32, #tpu.memory_space<vmem>>, vector<16x1xi32>
    %c0_1 = arith.constant 0 : index
    %c0_2 = arith.constant 0 : index
    %1 = vector.load %arg2[%c0_1, %c0_2] : memref<16x1xi32, #tpu.memory_space<vmem>>, vector<16x1xi32>
    %c0_3 = arith.constant 0 : index
    %c0_4 = arith.constant 0 : index
    %2 = vector.load %arg3[%c0_3, %c0_4] : memref<128x128xf32, #tpu.memory_space<vmem>>, vector<128x128xf32>
    %3 = tpu.iota {dimensions = array<i32: 1>} : vector<16x128xi32>
    %4 = vector.broadcast %0 : vector<16x1xi32> to vector<16x128xi32>
    %5 = arith.cmpi eq, %3, %4 : vector<16x128xi32>
    %6 = arith.extui %5 : vector<16x128xi1> to vector<16x128xi32>
    %7 = arith.sitofp %6 : vector<16x128xi32> to vector<16x128xf32>
    %cst = arith.constant dense<0.000000e+00> : vector<16x128xf32>
    %8 = tpu.matmul %7, %2, %cst {dimension_numbers = #tpu.dot_dimension_numbers<[1], [0], [0], [1], [0, 0, 1, 1], [], []>, precision = #tpu.contract_precision<fp32>} : vector<16x128xf32>, vector<128x128xf32>, vector<16x128xf32> -> vector<16x128xf32>
    %c0_5 = arith.constant 0 : index
    %c0_6 = arith.constant 0 : index
    %9 = vector.load %arg4[%c0_5, %c0_6] : memref<16x128xf32, #tpu.memory_space<vmem>>, vector<16x128xf32>
    tpu.vector_store %arg4[%c0_5, %c0_6], %8 {strides = array<i32>} : memref<16x128xf32, #tpu.memory_space<vmem>>, vector<16x128xf32>,
    %cst_7 = arith.constant dense<0xFF800000> : vector<16xf32>
    %10 = vector.multi_reduction <maximumf>, %8, %cst_7 [1] : vector<16x128xf32> to vector<16xf32>
    %11 = vector.shape_cast %10 : vector<16xf32> to vector<16x1xf32>
    %12 = vector.broadcast %11 : vector<16x1xf32> to vector<16x128xf32>
    %13 = arith.subf %8, %12 : vector<16x128xf32>
    %14 = math.exp %13 : vector<16x128xf32>
    %cst_8 = arith.constant dense<0.000000e+00> : vector<16xf32>
    %15 = vector.multi_reduction <add>, %14, %cst_8 [1] : vector<16x128xf32> to vector<16xf32>
    %16 = vector.shape_cast %15 : vector<16xf32> to vector<16x1xf32>
    %17 = math.log %16 : vector<16x1xf32>
    %18 = arith.addf %17, %11 : vector<16x1xf32>
    %19 = vector.broadcast %1 : vector<16x1xi32> to vector<16x128xi32>
    %20 = arith.cmpi eq, %3, %19 : vector<16x128xi32>
    %cst_9 = arith.constant 0.000000e+00 : f32
    %21 = vector.broadcast %cst_9 : f32 to vector<16x128xf32>
    %22 = arith.select %20, %8, %21 : vector<16x128xi1>, vector<16x128xf32>
    %cst_10 = arith.constant dense<0.000000e+00> : vector<16xf32>
    %23 = vector.multi_reduction <add>, %22, %cst_10 [1] : vector<16x128xf32> to vector<16xf32>
    %24 = vector.shape_cast %23 : vector<16xf32> to vector<16x1xf32>
    %c16_i32 = arith.constant 16 : i32
    %25 = arith.muli %arg0, %c16_i32 : i32
    %26 = tpu.iota {dimensions = array<i32: 0>} : vector<16x1xi32>
    %27 = vector.broadcast %25 : i32 to vector<16x1xi32>
    %28 = arith.addi %27, %26 : vector<16x1xi32>
    %c16_i32_11 = arith.constant 16 : i32
    %29 = vector.broadcast %c16_i32_11 : i32 to vector<16x1xi32>
    %30 = arith.cmpi slt, %28, %29 : vector<16x1xi32>
    %31 = arith.subf %18, %24 : vector<16x1xf32>
    %cst_12 = arith.constant 0.000000e+00 : f32
    %32 = vector.broadcast %cst_12 : f32 to vector<16x1xf32>
    %33 = arith.select %30, %31, %32 : vector<16x1xi1>, vector<16x1xf32>
    %cst_13 = arith.constant dense<0.000000e+00> : vector<1xf32>
    %34 = vector.multi_reduction <add>, %33, %cst_13 [0] : vector<16x1xf32> to vector<1xf32>
    %35 = vector.shape_cast %34 : vector<1xf32> to vector<1x1xf32>
    %36 = vector.shape_cast %35 : vector<1x1xf32> to vector<1x1x1xf32>
    %37 = vector.shape_cast %36 : vector<1x1x1xf32> to vector<1x1x1xf32>
    %38 = vector.broadcast %37 : vector<1x1x1xf32> to vector<1x8x128xf32>
    %c0_14 = arith.constant 0 : index
    %c0_15 = arith.constant 0 : index
    %c0_16 = arith.constant 0 : index
    %39 = vector.load %arg5[%c0_14, %c0_15, %c0_16] : memref<1x8x128xf32, #tpu.memory_space<vmem>>, vector<1x8x128xf32>
    tpu.vector_store %arg5[%c0_14, %c0_15, %c0_16], %38 {strides = array<i32>} : memref<1x8x128xf32, #tpu.memory_space<vmem>>, vector<1x8x128xf32>,
    return
  }
  func.func @transform_0(%arg0: i32) -> (i32, i32) {
    %c0_i32 = arith.constant 0 : i32
    %c0_i32_0 = arith.constant 0 : i32
    return %arg0, %c0_i32 : i32, i32
  }
  func.func @transform_1(%arg0: i32) -> (i32, i32) {
    %c0_i32 = arith.constant 0 : i32
    %c0_i32_0 = arith.constant 0 : i32
    return %arg0, %c0_i32 : i32, i32
  }
  func.func @transform_2(%arg0: i32) -> (i32, i32) {
    %c0_i32 = arith.constant 0 : i32
    %c0_i32_0 = arith.constant 0 : i32
    %c0_i32_1 = arith.constant 0 : i32
    return %c0_i32, %c0_i32_0 : i32, i32
  }
  func.func @transform_3(%arg0: i32) -> (i32, i32) {
    %c0_i32 = arith.constant 0 : i32
    %c0_i32_0 = arith.constant 0 : i32
    return %arg0, %c0_i32 : i32, i32
  }
  func.func @transform_4(%arg0: i32) -> (i32, i32, i32) {
    %c0_i32 = arith.constant 0 : i32
    %c0_i32_0 = arith.constant 0 : i32
    %c0_i32_1 = arith.constant 0 : i32
    return %arg0, %c0_i32, %c0_i32_0 : i32, i32, i32
  }
}

</mosaic_0001>

<llo_original>
// kernel: tpu_custom_call.1
$region0: #{tpu_custom_call.1}
  #allocation0 [shape = 'u32[]', space=smem, size = 0x4, offset = 0x4, fixed_abs, tag = 'smem constant byte address 0x4 - core index']
  #allocation1 [shape = 'u32[144,128]{1,0:T(1,128)}', space=vmem, size = 0x12000, scoped, tag = 'internal scratch']
  %s0 = inlined_call_operand.vmem [shape: s32[16,1], index: 0, kind: input, shape index: {}]
  %s1 = inlined_call_operand.vmem [shape: s32[16,1], index: 1, kind: input, shape index: {}]
  %s2 = inlined_call_operand.hbm [shape: f32[128,128], index: 2, kind: input, shape index: {}]
  %s3 = inlined_call_operand.hbm [shape: f32[16,128], index: 3, kind: output, shape index: {0}]
  %s4 = inlined_call_operand.hbm [shape: f32[1,8,128], index: 4, kind: output, shape index: {1}]
  %5 = xla_tuple %s3, %s4
  %s6 = sld [smem:[#allocation0]]
  $region34: #{tpu_custom_call.1} parent=0
    _
  %s8 = ssub.s32 1, %s6
  %s9 = scalar_select 0, %s8, %s6
  $region1: #{tpu_custom_call.1} parent=0
    #allocation2 [shape = 'u8[65536]{0}', space=vmem, size = 0x10000, scoped, tag = 'input window, operand 2, single buffered']
    #allocation3 [shape = 's32[1]{0}', space=sflag, size = 0x4, scoped, tag = 'scoped memory for tpu_custom_call.1']
    #allocation4 [shape = 's32[1]{0}', space=sflag, size = 0x4, scoped, tag = 'scoped memory for tpu_custom_call.1']
    #allocation5 [shape = 'u8[8192]{0}', space=vmem, size = 0x2000, scoped, tag = 'output window, operand 0, single buffered']
    #allocation6 [shape = 'u8[4096]{0}', space=vmem, size = 0x1000, scoped, tag = 'output window, operand 1, single buffered']
    #allocation7 [shape = 's32[1]{0}', space=sflag, size = 0x4, scoped, tag = 'scoped memory for tpu_custom_call.1']
    %10 = vsyncpa [#allocation3], 0
    %11 = vsyncpa [#allocation4], 0
    %12 = vsyncpa [#allocation7], 0
    // Predicated region
    $region2: #{tpu_custom_call.1} parent=1 // pred_check
      _
    $region3: #{tpu_custom_call.1} parent=1 // pred_check_branch
      %14 = sbr.rel (0) target = $region5
    $region4: #{tpu_custom_call.1} parent=1 // pred_region
      _
    $region5: #{tpu_custom_call.1} parent=1 // pred_fallthru
      _
    // Predicated region
    $region6: #{tpu_custom_call.1} parent=1 // pred_check
      _
    $region7: #{tpu_custom_call.1} parent=1 // pred_check_branch
      %16 = sbr.rel (0) target = $region9
    $region8: #{tpu_custom_call.1} parent=1 // pred_region
      _
    $region9: #{tpu_custom_call.1} parent=1 // pred_fallthru
      _
    // Predicated region
    $region10: #{tpu_custom_call.1} parent=1 // pred_check
      _
    $region11: #{tpu_custom_call.1} parent=1 // pred_check_branch
      %18 = sbr.rel (0) target = $region13
    $region12: #{tpu_custom_call.1} parent=1 // pred_region
      %s20 = ssub.s32 2048, 2048
      %21 = vsyncadd [#allocation3], %s20
      %s22 = sshll.u32 [#allocation2], 4
      %s23 = int_to_ptr.vmem [resolvable:$true] %s22
      %28 = dma.hbm_to_vmem [thread:$0]  %s2, 2048, %s23, [#allocation3], 128, 128, 8
    $region13: #{tpu_custom_call.1} parent=1 // pred_fallthru
      _
    // Predicated region
    $region14: #{tpu_custom_call.1} parent=1 // pred_check
      _
    $region15: #{tpu_custom_call.1} parent=1 // pred_check_branch
      %30 = sbr.rel (0) target = $region17
    $region16: #{tpu_custom_call.1} parent=1 // pred_region
      %31 = dma.done [#allocation3], 2048
    $region17: #{tpu_custom_call.1} parent=1 // pred_fallthru
      _
    %v32 = vld [vmem:[%s0] sm:$0xff]
    %v33 = vld [vmem:[%s0 + $0x8] sm:$0xff]
    %v34 = vld [vmem:[%s1] sm:$0xff]
    %v35 = vld [vmem:[%s1 + $0x8] sm:$0xff]
    %v36 = vld [vmem:[#allocation2] sm:$0xff]
    %v37 = vld [vmem:[#allocation2 + $0x8] sm:$0xff]
    %v38 = vld [vmem:[#allocation2 + $0x10] sm:$0xff]
    %v39 = vld [vmem:[#allocation2 + $0x18] sm:$0xff]
    %v40 = vld [vmem:[#allocation2 + $0x20] sm:$0xff]
    %v41 = vld [vmem:[#allocation2 + $0x28] sm:$0xff]
    %v42 = vld [vmem:[#allocation2 + $0x30] sm:$0xff]
    %v43 = vld [vmem:[#allocation2 + $0x38] sm:$0xff]
    %v44 = vld [vmem:[#allocation2 + $0x40] sm:$0xff]
    %v45 = vld [vmem:[#allocation2 + $0x48] sm:$0xff]
    %v46 = vld [vmem:[#allocation2 + $0x50] sm:$0xff]
    %v47 = vld [vmem:[#allocation2 + $0x58] sm:$0xff]
    %v48 = vld [vmem:[#allocation2 + $0x60] sm:$0xff]
    %v49 = vld [vmem:[#allocation2 + $0x68] sm:$0xff]
    %v50 = vld [vmem:[#allocation2 + $0x70] sm:$0xff]
    %v51 = vld [vmem:[#allocation2 + $0x78] sm:$0xff]
    %v52 = vlaneseq
    %v53 = vand.u32 %v52, 127
    %54 = vset.pattern.permute.xlu0 0
    %55 = vperm.xlu0 %54, %v32
    %v56 = vpop.permute.xlu0 %55
    %57 = vset.pattern.permute.xlu0 0
    %58 = vperm.xlu0 %57, %v33
    %v59 = vpop.permute.xlu0 %58
    %vm60 = vcmp.eq.s32.totalorder %v53, %v56
    %vm61 = vcmp.eq.s32.totalorder %v53, %v59
    %v62 = vsel %vm60, 1, 0
    %v63 = vsel %vm61, 1, 0
    %v64 = vcvt.s32.f32 %v62
    %v65 = vcvt.s32.f32 %v63
    %66 = vmatprep.subr.mxu0 0.0
    %v67 = vand.u32 %v36, 4294901760
    %68 = vmatpush1.msra.mxu0 %v67
    %69 = vmatprep.subr.mxu0 0.0
    %v70 = vand.u32 %v37, 4294901760
    %71 = vmatpush1.msra.mxu0 %v70
    %72 = vmatprep.subr.mxu0 0.0
    %v73 = vand.u32 %v38, 4294901760
    %74 = vmatpush1.msra.mxu0 %v73
    %75 = vmatprep.subr.mxu0 0.0
    %v76 = vand.u32 %v39, 4294901760
    %77 = vmatpush1.msra.mxu0 %v76
    %78 = vmatprep.subr.mxu0 0.0
    %v79 = vand.u32 %v40, 4294901760
    %80 = vmatpush1.msra.mxu0 %v79
    %81 = vmatprep.subr.mxu0 0.0
    %v82 = vand.u32 %v41, 4294901760
    %83 = vmatpush1.msra.mxu0 %v82
    %84 = vmatprep.subr.mxu0 0.0
    %v85 = vand.u32 %v42, 4294901760
    %86 = vmatpush1.msra.mxu0 %v85
    %87 = vmatprep.subr.mxu0 0.0
    %v88 = vand.u32 %v43, 4294901760
    %89 = vmatpush1.msra.mxu0 %v88
    %90 = vmatprep.subr.mxu0 0.0
    %v91 = vand.u32 %v44, 4294901760
    %92 = vmatpush1.msra.mxu0 %v91
    %93 = vmatprep.subr.mxu0 0.0
    %v94 = vand.u32 %v45, 4294901760
    %95 = vmatpush1.msra.mxu0 %v94
    %96 = vmatprep.subr.mxu0 0.0
    %v97 = vand.u32 %v46, 4294901760
    %98 = vmatpush1.msra.mxu0 %v97
    %99 = vmatprep.subr.mxu0 0.0
    %v100 = vand.u32 %v47, 4294901760
    %101 = vmatpush1.msra.mxu0 %v100
    %102 = vmatprep.subr.mxu0 0.0
    %v103 = vand.u32 %v48, 4294901760
    %104 = vmatpush1.msra.mxu0 %v103
    %105 = vmatprep.subr.mxu0 0.0
    %v106 = vand.u32 %v49, 4294901760
    %107 = vmatpush1.msra.mxu0 %v106
    %108 = vmatprep.subr.mxu0 0.0
    %v109 = vand.u32 %v50, 4294901760
    %110 = vmatpush1.msra.mxu0 %v109
    %111 = vmatprep.subr.mxu0 0.0
    %v112 = vand.u32 %v51, 4294901760
    %113 = vmatpush1.msra.mxu0 %v112
    %114 = vmatprep.subr.mxu0 0.0
    %115 = vmatpush1.msra.mxu0 0.0
    %116 = vmatprep.subr.mxu0 0.0
    %117 = vmatpush1.msra.mxu0 0.0
    %118 = vmatprep.subr.mxu0 0.0
    %119 = vmatpush1.msra.mxu0 0.0
    %120 = vmatprep.subr.mxu0 0.0
    %121 = vmatpush1.msra.mxu0 0.0
    %122 = vmatprep.subr.mxu0 0.0
    %123 = vmatpush1.msra.mxu0 0.0
    %124 = vmatprep.subr.mxu0 0.0
    %125 = vmatpush1.msra.mxu0 0.0
    %126 = vmatprep.subr.mxu0 0.0
    %127 = vmatpush1.msra.mxu0 0.0
    %128 = vmatprep.subr.mxu0 0.0
    %129 = vmatpush1.msra.mxu0 0.0
    %130 = vmatprep.subr.mxu0 0.0
    %131 = vmatpush1.msra.mxu0 0.0
    %132 = vmatprep.subr.mxu0 0.0
    %133 = vmatpush1.msra.mxu0 0.0
    %134 = vmatprep.subr.mxu0 0.0
    %135 = vmatpush1.msra.mxu0 0.0
    %136 = vmatprep.subr.mxu0 0.0
    %137 = vmatpush1.msra.mxu0 0.0
    %138 = vmatprep.subr.mxu0 0.0
    %139 = vmatpush1.msra.mxu0 0.0
    %140 = vmatprep.subr.mxu0 0.0
    %141 = vmatpush1.msra.mxu0 0.0
    %142 = vmatprep.subr.mxu0 0.0
    %143 = vmatpush1.msra.mxu0 0.0
    %144 = vmatprep.subr.mxu0 0.0
    %145 = vmatpush1.msra.mxu0 0.0
    %146 = vmatprep.mubr.f32.mxu0 0.0
    %v147 = vand.u32 %v64, 4294901760
    %v148 = vsub.f32 %v64, %v147
    %v149 = vand.u32 %v148, 4294901760
    %v150 = vsub.f32 %v148, %v149
    %v151 = vand.u32 %v150, 4294901760
    %152 = vmatmul.mubr.f32.gmra.mrb[0].mxu0 %v151
    %v153 = vpop.f32.mrb[0].mxu0
    %v154 = vadd.f32 0.0, %v153
    %v155 = vpop.f32.mrb[0].mxu0
    %156 = vmatprep.mubr.f32.mxu0 0.0
    %v157 = vand.u32 %v65, 4294901760
    %v158 = vsub.f32 %v65, %v157
    %v159 = vand.u32 %v158, 4294901760
    %v160 = vsub.f32 %v158, %v159
    %v161 = vand.u32 %v160, 4294901760
    %162 = vmatmul.mubr.f32.gmra.mrb[0].mxu0 %v161
    %v163 = vpop.f32.mrb[0].mxu0
    %v164 = vadd.f32 0.0, %v163
    %v165 = vpop.f32.mrb[0].mxu0
    %166 = vdwg.mxu0
    %167 = vmatprep.subr.mxu0 0.0
    %v168 = vand.u32 %v36, 4294901760
    %v169 = vsub.f32 %v36, %v168
    %v170 = vand.u32 %v169, 4294901760
    %v171 = vsub.f32 %v169, %v170
    %v172 = vand.u32 %v171, 4294901760
    %173 = vmatpush1.msra.mxu0 %v172
    %174 = vmatprep.subr.mxu0 0.0
    %v175 = vand.u32 %v37, 4294901760
    %v176 = vsub.f32 %v37, %v175
    %v177 = vand.u32 %v176, 4294901760
    %v178 = vsub.f32 %v176, %v177
    %v179 = vand.u32 %v178, 4294901760
    %180 = vmatpush1.msra.mxu0 %v179
    %181 = vmatprep.subr.mxu0 0.0
    %v182 = vand.u32 %v38, 4294901760
    %v183 = vsub.f32 %v38, %v182
    %v184 = vand.u32 %v183, 4294901760
    %v185 = vsub.f32 %v183, %v184
    %v186 = vand.u32 %v185, 4294901760
    %187 = vmatpush1.msra.mxu0 %v186
    %188 = vmatprep.subr.mxu0 0.0
    %v189 = vand.u32 %v39, 4294901760
    %v190 = vsub.f32 %v39, %v189
    %v191 = vand.u32 %v190, 4294901760
    %v192 = vsub.f32 %v190, %v191
    %v193 = vand.u32 %v192, 4294901760
    %194 = vmatpush1.msra.mxu0 %v193
    %195 = vmatprep.subr.mxu0 0.0
    %v196 = vand.u32 %v40, 4294901760
    %v197 = vsub.f32 %v40, %v196
    %v198 = vand.u32 %v197, 4294901760
    %v199 = vsub.f32 %v197, %v198
    %v200 = vand.u32 %v199, 4294901760
    %201 = vmatpush1.msra.mxu0 %v200
    %202 = vmatprep.subr.mxu0 0.0
    %v203 = vand.u32 %v41, 4294901760
    %v204 = vsub.f32 %v41, %v203
    %v205 = vand.u32 %v204, 4294901760
    %v206 = vsub.f32 %v204, %v205
    %v207 = vand.u32 %v206, 4294901760
    %208 = vmatpush1.msra.mxu0 %v207
    %209 = vmatprep.subr.mxu0 0.0
    %v210 = vand.u32 %v42, 4294901760
    %v211 = vsub.f32 %v42, %v210
    %v212 = vand.u32 %v211, 4294901760
    %v213 = vsub.f32 %v211, %v212
    %v214 = vand.u32 %v213, 4294901760
    %215 = vmatpush1.msra.mxu0 %v214
    %216 = vmatprep.subr.mxu0 0.0
    %v217 = vand.u32 %v43, 4294901760
    %v218 = vsub.f32 %v43, %v217
    %v219 = vand.u32 %v218, 4294901760
    %v220 = vsub.f32 %v218, %v219
    %v221 = vand.u32 %v220, 4294901760
    %222 = vmatpush1.msra.mxu0 %v221
    %223 = vmatprep.subr.mxu0 0.0
    %v224 = vand.u32 %v44, 4294901760
    %v225 = vsub.f32 %v44, %v224
    %v226 = vand.u32 %v225, 4294901760
    %v227 = vsub.f32 %v225, %v226
    %v228 = vand.u32 %v227, 4294901760
    %229 = vmatpush1.msra.mxu0 %v228
    %230 = vmatprep.subr.mxu0 0.0
    %v231 = vand.u32 %v45, 4294901760
    %v232 = vsub.f32 %v45, %v231
    %v233 = vand.u32 %v232, 4294901760
    %v234 = vsub.f32 %v232, %v233
    %v235 = vand.u32 %v234, 4294901760
    %236 = vmatpush1.msra.mxu0 %v235
    %237 = vmatprep.subr.mxu0 0.0
    %v238 = vand.u32 %v46, 4294901760
    %v239 = vsub.f32 %v46, %v238
    %v240 = vand.u32 %v239, 4294901760
    %v241 = vsub.f32 %v239, %v240
    %v242 = vand.u32 %v241, 4294901760
    %243 = vmatpush1.msra.mxu0 %v242
    %244 = vmatprep.subr.mxu0 0.0
    %v245 = vand.u32 %v47, 4294901760
    %v246 = vsub.f32 %v47, %v245
    %v247 = vand.u32 %v246, 4294901760
    %v248 = vsub.f32 %v246, %v247
    %v249 = vand.u32 %v248, 4294901760
    %250 = vmatpush1.msra.mxu0 %v249
    %251 = vmatprep.subr.mxu0 0.0
    %v252 = vand.u32 %v48, 4294901760
    %v253 = vsub.f32 %v48, %v252
    %v254 = vand.u32 %v253, 4294901760
    %v255 = vsub.f32 %v253, %v254
    %v256 = vand.u32 %v255, 4294901760
    %257 = vmatpush1.msra.mxu0 %v256
    %258 = vmatprep.subr.mxu0 0.0
    %v259 = vand.u32 %v49, 4294901760
    %v260 = vsub.f32 %v49, %v259
    %v261 = vand.u32 %v260, 4294901760
    %v262 = vsub.f32 %v260, %v261
    %v263 = vand.u32 %v262, 4294901760
    %264 = vmatpush1.msra.mxu0 %v263
    %265 = vmatprep.subr.mxu0 0.0
    %v266 = vand.u32 %v50, 4294901760
    %v267 = vsub.f32 %v50, %v266
    %v268 = vand.u32 %v267, 4294901760
    %v269 = vsub.f32 %v267, %v268
    %v270 = vand.u32 %v269, 4294901760
    %271 = vmatpush1.msra.mxu0 %v270
    %272 = vmatprep.subr.mxu0 0.0
    %v273 = vand.u32 %v51, 4294901760
    %v274 = vsub.f32 %v51, %v273
    %v275 = vand.u32 %v274, 4294901760
    %v276 = vsub.f32 %v274, %v275
    %v277 = vand.u32 %v276, 4294901760
    %278 = vmatpush1.msra.mxu0 %v277
    %279 = vmatprep.subr.mxu0 0.0
    %280 = vmatpush1.msra.mxu0 0.0
    %281 = vmatprep.subr.mxu0 0.0
    %282 = vmatpush1.msra.mxu0 0.0
    %283 = vmatprep.subr.mxu0 0.0
    %284 = vmatpush1.msra.mxu0 0.0
    %285 = vmatprep.subr.mxu0 0.0
    %286 = vmatpush1.msra.mxu0 0.0
    %287 = vmatprep.subr.mxu0 0.0
    %288 = vmatpush1.msra.mxu0 0.0
    %289 = vmatprep.subr.mxu0 0.0
    %290 = vmatpush1.msra.mxu0 0.0
    %291 = vmatprep.subr.mxu0 0.0
    %292 = vmatpush1.msra.mxu0 0.0
    %293 = vmatprep.subr.mxu0 0.0
    %294 = vmatpush1.msra.mxu0 0.0
    %295 = vmatprep.subr.mxu0 0.0
    %296 = vmatpush1.msra.mxu0 0.0
    %297 = vmatprep.subr.mxu0 0.0
    %298 = vmatpush1.msra.mxu0 0.0
    %299 = vmatprep.subr.mxu0 0.0
    %300 = vmatpush1.msra.mxu0 0.0
    %301 = vmatprep.subr.mxu0 0.0
    %302 = vmatpush1.msra.mxu0 0.0
    %303 = vmatprep.subr.mxu0 0.0
    %304 = vmatpush1.msra.mxu0 0.0
    %305 = vmatprep.subr.mxu0 0.0
    %306 = vmatpush1.msra.mxu0 0.0
    %307 = vmatprep.subr.mxu0 0.0
    %308 = vmatpush1.msra.mxu0 0.0
    %309 = vmatprep.subr.mxu0 0.0
    %310 = vmatpush1.msra.mxu0 0.0
    %311 = vmatprep.mubr.f32.mxu0 0.0
    %v312 = vand.u32 %v64, 4294901760
    %313 = vmatmul.mubr.f32.gmra.mrb[0].mxu0 %v312
    %v314 = vpop.f32.mrb[0].mxu0
    %v315 = vadd.f32 %v154, %v314
    %v316 = vpop.f32.mrb[0].mxu0
    %317 = vmatprep.mubr.f32.mxu0 0.0
    %v318 = vand.u32 %v65, 4294901760
    %319 = vmatmul.mubr.f32.gmra.mrb[0].mxu0 %v318
    %v320 = vpop.f32.mrb[0].mxu0
    %v321 = vadd.f32 %v164, %v320
    %v322 = vpop.f32.mrb[0].mxu0
    %323 = vdwg.mxu0
    %324 = vmatprep.subr.mxu0 0.0
    %v325 = vand.u32 %v36, 4294901760
    %v326 = vsub.f32 %v36, %v325
    %327 = vmatpush1.msra.mxu0 %v326
    %328 = vmatprep.subr.mxu0 0.0
    %v329 = vand.u32 %v37, 4294901760
    %v330 = vsub.f32 %v37, %v329
    %331 = vmatpush1.msra.mxu0 %v330
    %332 = vmatprep.subr.mxu0 0.0
    %v333 = vand.u32 %v38, 4294901760
    %v334 = vsub.f32 %v38, %v333
    %335 = vmatpush1.msra.mxu0 %v334
    %336 = vmatprep.subr.mxu0 0.0
    %v337 = vand.u32 %v39, 4294901760
    %v338 = vsub.f32 %v39, %v337
    %339 = vmatpush1.msra.mxu0 %v338
    %340 = vmatprep.subr.mxu0 0.0
    %v341 = vand.u32 %v40, 4294901760
    %v342 = vsub.f32 %v40, %v341
    %343 = vmatpush1.msra.mxu0 %v342
    %344 = vmatprep.subr.mxu0 0.0
    %v345 = vand.u32 %v41, 4294901760
    %v346 = vsub.f32 %v41, %v345
    %347 = vmatpush1.msra.mxu0 %v346
    %348 = vmatprep.subr.mxu0 0.0
    %v349 = vand.u32 %v42, 4294901760
    %v350 = vsub.f32 %v42, %v349
    %351 = vmatpush1.msra.mxu0 %v350
    %352 = vmatprep.subr.mxu0 0.0
    %v353 = vand.u32 %v43, 4294901760
    %v354 = vsub.f32 %v43, %v353
    %355 = vmatpush1.msra.mxu0 %v354
    %356 = vmatprep.subr.mxu0 0.0
    %v357 = vand.u32 %v44, 4294901760
    %v358 = vsub.f32 %v44, %v357
    %359 = vmatpush1.msra.mxu0 %v358
    %360 = vmatprep.subr.mxu0 0.0
    %v361 = vand.u32 %v45, 4294901760
    %v362 = vsub.f32 %v45, %v361
    %363 = vmatpush1.msra.mxu0 %v362
    %364 = vmatprep.subr.mxu0 0.0
    %v365 = vand.u32 %v46, 4294901760
    %v366 = vsub.f32 %v46, %v365
    %367 = vmatpush1.msra.mxu0 %v366
    %368 = vmatprep.subr.mxu0 0.0
    %v369 = vand.u32 %v47, 4294901760
    %v370 = vsub.f32 %v47, %v369
    %371 = vmatpush1.msra.mxu0 %v370
    %372 = vmatprep.subr.mxu0 0.0
    %v373 = vand.u32 %v48, 4294901760
    %v374 = vsub.f32 %v48, %v373
    %375 = vmatpush1.msra.mxu0 %v374
    %376 = vmatprep.subr.mxu0 0.0
    %v377 = vand.u32 %v49, 4294901760
    %v378 = vsub.f32 %v49, %v377
    %379 = vmatpush1.msra.mxu0 %v378
    %380 = vmatprep.subr.mxu0 0.0
    %v381 = vand.u32 %v50, 4294901760
    %v382 = vsub.f32 %v50, %v381
    %383 = vmatpush1.msra.mxu0 %v382
    %384 = vmatprep.subr.mxu0 0.0
    %v385 = vand.u32 %v51, 4294901760
    %v386 = vsub.f32 %v51, %v385
    %387 = vmatpush1.msra.mxu0 %v386
    %388 = vmatprep.subr.mxu0 0.0
    %389 = vmatpush1.msra.mxu0 0.0
    %390 = vmatprep.subr.mxu0 0.0
    %391 = vmatpush1.msra.mxu0 0.0
    %392 = vmatprep.subr.mxu0 0.0
    %393 = vmatpush1.msra.mxu0 0.0
    %394 = vmatprep.subr.mxu0 0.0
    %395 = vmatpush1.msra.mxu0 0.0
    %396 = vmatprep.subr.mxu0 0.0
    %397 = vmatpush1.msra.mxu0 0.0
    %398 = vmatprep.subr.mxu0 0.0
    %399 = vmatpush1.msra.mxu0 0.0
    %400 = vmatprep.subr.mxu0 0.0
    %401 = vmatpush1.msra.mxu0 0.0
    %402 = vmatprep.subr.mxu0 0.0
    %403 = vmatpush1.msra.mxu0 0.0
    %404 = vmatprep.subr.mxu0 0.0
    %405 = vmatpush1.msra.mxu0 0.0
    %406 = vmatprep.subr.mxu0 0.0
    %407 = vmatpush1.msra.mxu0 0.0
    %408 = vmatprep.subr.mxu0 0.0
    %409 = vmatpush1.msra.mxu0 0.0
    %410 = vmatprep.subr.mxu0 0.0
    %411 = vmatpush1.msra.mxu0 0.0
    %412 = vmatprep.subr.mxu0 0.0
    %413 = vmatpush1.msra.mxu0 0.0
    %414 = vmatprep.subr.mxu0 0.0
    %415 = vmatpush1.msra.mxu0 0.0
    %416 = vmatprep.subr.mxu0 0.0
    %417 = vmatpush1.msra.mxu0 0.0
    %418 = vmatprep.subr.mxu0 0.0
    %419 = vmatpush1.msra.mxu0 0.0
    %420 = vmatprep.mubr.f32.mxu0 0.0
    %v421 = vand.u32 %v64, 4294901760
    %v422 = vsub.f32 %v64, %v421
    %423 = vmatmul.mubr.f32.gmra.mrb[0].mxu0 %v422
    %v424 = vpop.f32.mrb[0].mxu0
    %v425 = vadd.f32 %v315, %v424
    %v426 = vpop.f32.mrb[0].mxu0
    %427 = vmatprep.mubr.f32.mxu0 0.0
    %v428 = vand.u32 %v65, 4294901760
    %v429 = vsub.f32 %v65, %v428
    %430 = vmatmul.mubr.f32.gmra.mrb[0].mxu0 %v429
    %v431 = vpop.f32.mrb[0].mxu0
    %v432 = vadd.f32 %v321, %v431
    %v433 = vpop.f32.mrb[0].mxu0
    %434 = vdwg.mxu0
    %435 = vmatprep.subr.mxu0 0.0
    %v436 = vand.u32 %v36, 4294901760
    %437 = vmatpush1.msra.mxu0 %v436
    %438 = vmatprep.subr.mxu0 0.0
    %v439 = vand.u32 %v37, 4294901760
    %440 = vmatpush1.msra.mxu0 %v439
    %441 = vmatprep.subr.mxu0 0.0
    %v442 = vand.u32 %v38, 4294901760
    %443 = vmatpush1.msra.mxu0 %v442
    %444 = vmatprep.subr.mxu0 0.0
    %v445 = vand.u32 %v39, 4294901760
    %446 = vmatpush1.msra.mxu0 %v445
    %447 = vmatprep.subr.mxu0 0.0
    %v448 = vand.u32 %v40, 4294901760
    %449 = vmatpush1.msra.mxu0 %v448
    %450 = vmatprep.subr.mxu0 0.0
    %v451 = vand.u32 %v41, 4294901760
    %452 = vmatpush1.msra.mxu0 %v451
    %453 = vmatprep.subr.mxu0 0.0
    %v454 = vand.u32 %v42, 4294901760
    %455 = vmatpush1.msra.mxu0 %v454
    %456 = vmatprep.subr.mxu0 0.0
    %v457 = vand.u32 %v43, 4294901760
    %458 = vmatpush1.msra.mxu0 %v457
    %459 = vmatprep.subr.mxu0 0.0
    %v460 = vand.u32 %v44, 4294901760
    %461 = vmatpush1.msra.mxu0 %v460
    %462 = vmatprep.subr.mxu0 0.0
    %v463 = vand.u32 %v45, 4294901760
    %464 = vmatpush1.msra.mxu0 %v463
    %465 = vmatprep.subr.mxu0 0.0
    %v466 = vand.u32 %v46, 4294901760
    %467 = vmatpush1.msra.mxu0 %v466
    %468 = vmatprep.subr.mxu0 0.0
    %v469 = vand.u32 %v47, 4294901760
    %470 = vmatpush1.msra.mxu0 %v469
    %471 = vmatprep.subr.mxu0 0.0
    %v472 = vand.u32 %v48, 4294901760
    %473 = vmatpush1.msra.mxu0 %v472
    %474 = vmatprep.subr.mxu0 0.0
    %v475 = vand.u32 %v49, 4294901760
    %476 = vmatpush1.msra.mxu0 %v475
    %477 = vmatprep.subr.mxu0 0.0
    %v478 = vand.u32 %v50, 4294901760
    %479 = vmatpush1.msra.mxu0 %v478
    %480 = vmatprep.subr.mxu0 0.0
    %v481 = vand.u32 %v51, 4294901760
    %482 = vmatpush1.msra.mxu0 %v481
    %483 = vmatprep.subr.mxu0 0.0
    %484 = vmatpush1.msra.mxu0 0.0
    %485 = vmatprep.subr.mxu0 0.0
    %486 = vmatpush1.msra.mxu0 0.0
    %487 = vmatprep.subr.mxu0 0.0
    %488 = vmatpush1.msra.mxu0 0.0
    %489 = vmatprep.subr.mxu0 0.0
    %490 = vmatpush1.msra.mxu0 0.0
    %491 = vmatprep.subr.mxu0 0.0
    %492 = vmatpush1.msra.mxu0 0.0
    %493 = vmatprep.subr.mxu0 0.0
    %494 = vmatpush1.msra.mxu0 0.0
    %495 = vmatprep.subr.mxu0 0.0
    %496 = vmatpush1.msra.mxu0 0.0
    %497 = vmatprep.subr.mxu0 0.0
    %498 = vmatpush1.msra.mxu0 0.0
    %499 = vmatprep.subr.mxu0 0.0
    %500 = vmatpush1.msra.mxu0 0.0
    %501 = vmatprep.subr.mxu0 0.0
    %502 = vmatpush1.msra.mxu0 0.0
    %503 = vmatprep.subr.mxu0 0.0
    %504 = vmatpush1.msra.mxu0 0.0
    %505 = vmatprep.subr.mxu0 0.0
    %506 = vmatpush1.msra.mxu0 0.0
    %507 = vmatprep.subr.mxu0 0.0
    %508 = vmatpush1.msra.mxu0 0.0
    %509 = vmatprep.subr.mxu0 0.0
    %510 = vmatpush1.msra.mxu0 0.0
    %511 = vmatprep.subr.mxu0 0.0
    %512 = vmatpush1.msra.mxu0 0.0
    %513 = vmatprep.subr.mxu0 0.0
    %514 = vmatpush1.msra.mxu0 0.0
    %515 = vmatprep.mubr.f32.mxu0 0.0
    %v516 = vand.u32 %v64, 4294901760
    %v517 = vsub.f32 %v64, %v516
    %v518 = vand.u32 %v517, 4294901760
    %519 = vmatmul.mubr.f32.gmra.mrb[0].mxu0 %v518
    %v520 = vpop.f32.mrb[0].mxu0
    %v521 = vadd.f32 %v425, %v520
    %v522 = vpop.f32.mrb[0].mxu0
    %523 = vmatprep.mubr.f32.mxu0 0.0
    %v524 = vand.u32 %v65, 4294901760
    %v525 = vsub.f32 %v65, %v524
    %v526 = vand.u32 %v525, 4294901760
    %527 = vmatmul.mubr.f32.gmra.mrb[0].mxu0 %v526
    %v528 = vpop.f32.mrb[0].mxu0
    %v529 = vadd.f32 %v432, %v528
    %v530 = vpop.f32.mrb[0].mxu0
    %531 = vdwg.mxu0
    %532 = vmatprep.subr.mxu0 0.0
    %v533 = vand.u32 %v36, 4294901760
    %v534 = vsub.f32 %v36, %v533
    %v535 = vand.u32 %v534, 4294901760
    %536 = vmatpush1.msra.mxu0 %v535
    %537 = vmatprep.subr.mxu0 0.0
    %v538 = vand.u32 %v37, 4294901760
    %v539 = vsub.f32 %v37, %v538
    %v540 = vand.u32 %v539, 4294901760
    %541 = vmatpush1.msra.mxu0 %v540
    %542 = vmatprep.subr.mxu0 0.0
    %v543 = vand.u32 %v38, 4294901760
    %v544 = vsub.f32 %v38, %v543
    %v545 = vand.u32 %v544, 4294901760
    %546 = vmatpush1.msra.mxu0 %v545
    %547 = vmatprep.subr.mxu0 0.0
    %v548 = vand.u32 %v39, 4294901760
    %v549 = vsub.f32 %v39, %v548
    %v550 = vand.u32 %v549, 4294901760
    %551 = vmatpush1.msra.mxu0 %v550
    %552 = vmatprep.subr.mxu0 0.0
    %v553 = vand.u32 %v40, 4294901760
    %v554 = vsub.f32 %v40, %v553
    %v555 = vand.u32 %v554, 4294901760
    %556 = vmatpush1.msra.mxu0 %v555
    %557 = vmatprep.subr.mxu0 0.0
    %v558 = vand.u32 %v41, 4294901760
    %v559 = vsub.f32 %v41, %v558
    %v560 = vand.u32 %v559, 4294901760
    %561 = vmatpush1.msra.mxu0 %v560
    %562 = vmatprep.subr.mxu0 0.0
    %v563 = vand.u32 %v42, 4294901760
    %v564 = vsub.f32 %v42, %v563
    %v565 = vand.u32 %v564, 4294901760
    %566 = vmatpush1.msra.mxu0 %v565
    %567 = vmatprep.subr.mxu0 0.0
    %v568 = vand.u32 %v43, 4294901760
    %v569 = vsub.f32 %v43, %v568
    %v570 = vand.u32 %v569, 4294901760
    %571 = vmatpush1.msra.mxu0 %v570
    %572 = vmatprep.subr.mxu0 0.0
    %v573 = vand.u32 %v44, 4294901760
    %v574 = vsub.f32 %v44, %v573
    %v575 = vand.u32 %v574, 4294901760
    %576 = vmatpush1.msra.mxu0 %v575
    %577 = vmatprep.subr.mxu0 0.0
    %v578 = vand.u32 %v45, 4294901760
    %v579 = vsub.f32 %v45, %v578
    %v580 = vand.u32 %v579, 4294901760
    %581 = vmatpush1.msra.mxu0 %v580
    %582 = vmatprep.subr.mxu0 0.0
    %v583 = vand.u32 %v46, 4294901760
    %v584 = vsub.f32 %v46, %v583
    %v585 = vand.u32 %v584, 4294901760
    %586 = vmatpush1.msra.mxu0 %v585
    %587 = vmatprep.subr.mxu0 0.0
    %v588 = vand.u32 %v47, 4294901760
    %v589 = vsub.f32 %v47, %v588
    %v590 = vand.u32 %v589, 4294901760
    %591 = vmatpush1.msra.mxu0 %v590
    %592 = vmatprep.subr.mxu0 0.0
    %v593 = vand.u32 %v48, 4294901760
    %v594 = vsub.f32 %v48, %v593
    %v595 = vand.u32 %v594, 4294901760
    %596 = vmatpush1.msra.mxu0 %v595
    %597 = vmatprep.subr.mxu0 0.0
    %v598 = vand.u32 %v49, 4294901760
    %v599 = vsub.f32 %v49, %v598
    %v600 = vand.u32 %v599, 4294901760
    %601 = vmatpush1.msra.mxu0 %v600
    %602 = vmatprep.subr.mxu0 0.0
    %v603 = vand.u32 %v50, 4294901760
    %v604 = vsub.f32 %v50, %v603
    %v605 = vand.u32 %v604, 4294901760
    %606 = vmatpush1.msra.mxu0 %v605
    %607 = vmatprep.subr.mxu0 0.0
    %v608 = vand.u32 %v51, 4294901760
    %v609 = vsub.f32 %v51, %v608
    %v610 = vand.u32 %v609, 4294901760
    %611 = vmatpush1.msra.mxu0 %v610
    %612 = vmatprep.subr.mxu0 0.0
    %613 = vmatpush1.msra.mxu0 0.0
    %614 = vmatprep.subr.mxu0 0.0
    %615 = vmatpush1.msra.mxu0 0.0
    %616 = vmatprep.subr.mxu0 0.0
    %617 = vmatpush1.msra.mxu0 0.0
    %618 = vmatprep.subr.mxu0 0.0
    %619 = vmatpush1.msra.mxu0 0.0
    %620 = vmatprep.subr.mxu0 0.0
    %621 = vmatpush1.msra.mxu0 0.0
    %622 = vmatprep.subr.mxu0 0.0
    %623 = vmatpush1.msra.mxu0 0.0
    %624 = vmatprep.subr.mxu0 0.0
    %625 = vmatpush1.msra.mxu0 0.0
    %626 = vmatprep.subr.mxu0 0.0
    %627 = vmatpush1.msra.mxu0 0.0
    %628 = vmatprep.subr.mxu0 0.0
    %629 = vmatpush1.msra.mxu0 0.0
    %630 = vmatprep.subr.mxu0 0.0
    %631 = vmatpush1.msra.mxu0 0.0
    %632 = vmatprep.subr.mxu0 0.0
    %633 = vmatpush1.msra.mxu0 0.0
    %634 = vmatprep.subr.mxu0 0.0
    %635 = vmatpush1.msra.mxu0 0.0
    %636 = vmatprep.subr.mxu0 0.0
    %637 = vmatpush1.msra.mxu0 0.0
    %638 = vmatprep.subr.mxu0 0.0
    %639 = vmatpush1.msra.mxu0 0.0
    %640 = vmatprep.subr.mxu0 0.0
    %641 = vmatpush1.msra.mxu0 0.0
    %642 = vmatprep.subr.mxu0 0.0
    %643 = vmatpush1.msra.mxu0 0.0
    %644 = vmatprep.mubr.f32.mxu0 0.0
    %v645 = vand.u32 %v64, 4294901760
    %646 = vmatmul.mubr.f32.gmra.mrb[0].mxu0 %v645
    %v647 = vpop.f32.mrb[0].mxu0
    %v648 = vadd.f32 %v521, %v647
    %v649 = vpop.f32.mrb[0].mxu0
    %650 = vmatprep.mubr.f32.mxu0 0.0
    %v651 = vand.u32 %v65, 4294901760
    %652 = vmatmul.mubr.f32.gmra.mrb[0].mxu0 %v651
    %v653 = vpop.f32.mrb[0].mxu0
    %v654 = vadd.f32 %v529, %v653
    %v655 = vpop.f32.mrb[0].mxu0
    %656 = vdwg.mxu0
    %657 = vmatprep.subr.mxu0 0.0
    %v658 = vand.u32 %v36, 4294901760
    %659 = vmatpush1.msra.mxu0 %v658
    %660 = vmatprep.subr.mxu0 0.0
    %v661 = vand.u32 %v37, 4294901760
    %662 = vmatpush1.msra.mxu0 %v661
    %663 = vmatprep.subr.mxu0 0.0
    %v664 = vand.u32 %v38, 4294901760
    %665 = vmatpush1.msra.mxu0 %v664
    %666 = vmatprep.subr.mxu0 0.0
    %v667 = vand.u32 %v39, 4294901760
    %668 = vmatpush1.msra.mxu0 %v667
    %669 = vmatprep.subr.mxu0 0.0
    %v670 = vand.u32 %v40, 4294901760
    %671 = vmatpush1.msra.mxu0 %v670
    %672 = vmatprep.subr.mxu0 0.0
    %v673 = vand.u32 %v41, 4294901760
    %674 = vmatpush1.msra.mxu0 %v673
    %675 = vmatprep.subr.mxu0 0.0
    %v676 = vand.u32 %v42, 4294901760
    %677 = vmatpush1.msra.mxu0 %v676
    %678 = vmatprep.subr.mxu0 0.0
    %v679 = vand.u32 %v43, 4294901760
    %680 = vmatpush1.msra.mxu0 %v679
    %681 = vmatprep.subr.mxu0 0.0
    %v682 = vand.u32 %v44, 4294901760
    %683 = vmatpush1.msra.mxu0 %v682
    %684 = vmatprep.subr.mxu0 0.0
    %v685 = vand.u32 %v45, 4294901760
    %686 = vmatpush1.msra.mxu0 %v685
    %687 = vmatprep.subr.mxu0 0.0
    %v688 = vand.u32 %v46, 4294901760
    %689 = vmatpush1.msra.mxu0 %v688
    %690 = vmatprep.subr.mxu0 0.0
    %v691 = vand.u32 %v47, 4294901760
    %692 = vmatpush1.msra.mxu0 %v691
    %693 = vmatprep.subr.mxu0 0.0
    %v694 = vand.u32 %v48, 4294901760
    %695 = vmatpush1.msra.mxu0 %v694
    %696 = vmatprep.subr.mxu0 0.0
    %v697 = vand.u32 %v49, 4294901760
    %698 = vmatpush1.msra.mxu0 %v697
    %699 = vmatprep.subr.mxu0 0.0
    %v700 = vand.u32 %v50, 4294901760
    %701 = vmatpush1.msra.mxu0 %v700
    %702 = vmatprep.subr.mxu0 0.0
    %v703 = vand.u32 %v51, 4294901760
    %704 = vmatpush1.msra.mxu0 %v703
    %705 = vmatprep.subr.mxu0 0.0
    %706 = vmatpush1.msra.mxu0 0.0
    %707 = vmatprep.subr.mxu0 0.0
    %708 = vmatpush1.msra.mxu0 0.0
    %709 = vmatprep.subr.mxu0 0.0
    %710 = vmatpush1.msra.mxu0 0.0
    %711 = vmatprep.subr.mxu0 0.0
    %712 = vmatpush1.msra.mxu0 0.0
    %713 = vmatprep.subr.mxu0 0.0
    %714 = vmatpush1.msra.mxu0 0.0
    %715 = vmatprep.subr.mxu0 0.0
    %716 = vmatpush1.msra.mxu0 0.0
    %717 = vmatprep.subr.mxu0 0.0
    %718 = vmatpush1.msra.mxu0 0.0
    %719 = vmatprep.subr.mxu0 0.0
    %720 = vmatpush1.msra.mxu0 0.0
    %721 = vmatprep.subr.mxu0 0.0
    %722 = vmatpush1.msra.mxu0 0.0
    %723 = vmatprep.subr.mxu0 0.0
    %724 = vmatpush1.msra.mxu0 0.0
    %725 = vmatprep.subr.mxu0 0.0
    %726 = vmatpush1.msra.mxu0 0.0
    %727 = vmatprep.subr.mxu0 0.0
    %728 = vmatpush1.msra.mxu0 0.0
    %729 = vmatprep.subr.mxu0 0.0
    %730 = vmatpush1.msra.mxu0 0.0
    %731 = vmatprep.subr.mxu0 0.0
    %732 = vmatpush1.msra.mxu0 0.0
    %733 = vmatprep.subr.mxu0 0.0
    %734 = vmatpush1.msra.mxu0 0.0
    %735 = vmatprep.subr.mxu0 0.0
    %736 = vmatpush1.msra.mxu0 0.0
    %737 = vmatprep.mubr.f32.mxu0 0.0
    %v738 = vand.u32 %v64, 4294901760
    %739 = vmatmul.mubr.f32.gmra.mrb[0].mxu0 %v738
    %v740 = vpop.f32.mrb[0].mxu0
    %v741 = vadd.f32 %v648, %v740
    %v742 = vpop.f32.mrb[0].mxu0
    %743 = vmatprep.mubr.f32.mxu0 0.0
    %v744 = vand.u32 %v65, 4294901760
    %745 = vmatmul.mubr.f32.gmra.mrb[0].mxu0 %v744
    %v746 = vpop.f32.mrb[0].mxu0
    %v747 = vadd.f32 %v654, %v746
    %v748 = vpop.f32.mrb[0].mxu0
    %749 = vdwg.mxu0
    %750 = vst [vmem:[#allocation5] sm:$0xff] %v741
    %751 = vst [vmem:[#allocation5 + $0x8] sm:$0xff] %v747
    %752 = vmax.xlane.f32.xlu0 %v741
    %v753 = vpop.xlane.xlu0 %752
    %754 = vmax.xlane.f32.xlu0 %v747
    %v755 = vpop.xlane.xlu0 %754
    %v756 = vsub.f32 %v741, %v753
    %v757 = vsub.f32 %v747, %v755
    %v758 = vmul.f32 %v756, 1.442695
    %v759 = vpow.pop %v758
    %v760 = vmul.f32 %v757, 1.442695
    %v761 = vpow.pop %v760
    %762 = vadd.xlane.f32.xlu0 %v759
    %v763 = vpop.xlane.xlu0 %762
    %764 = vadd.xlane.f32.xlu0 %v761
    %v765 = vpop.xlane.xlu0 %764
    %v766 = vlog2.pop %v763
    %v767 = vmul.f32 %v766, 0.6931472
    %v768 = vlog2.pop %v765
    %v769 = vmul.f32 %v768, 0.6931472
    %v770 = vadd.f32 %v767, %v753
    %v771 = vadd.f32 %v769, %v755
    %772 = vset.pattern.permute.xlu0 0
    %773 = vperm.xlu0 %772, %v34
    %v774 = vpop.permute.xlu0 %773
    %775 = vset.pattern.permute.xlu0 0
    %776 = vperm.xlu0 %775, %v35
    %v777 = vpop.permute.xlu0 %776
    %vm778 = vcmp.eq.s32.totalorder %v53, %v774
    %vm779 = vcmp.eq.s32.totalorder %v53, %v777
    %v780 = vsel %vm778, %v741, 0.0
    %v781 = vsel %vm779, %v747, 0.0
    %782 = vadd.xlane.f32.xlu0 %v780
    %v783 = vpop.xlane.xlu0 %782
    %784 = vadd.xlane.f32.xlu0 %v781
    %v785 = vpop.xlane.xlu0 %784
    %s786 = smul.u32 0, 16
    %v787 = vlaneseq
    %v788 = vshrl.u32 %v787, 7
    %v789 = vadd.s32 %v788, 8
    %v790 = vstv %s786
    %v791 = vadd.s32 %v790, %v788
    %v792 = vadd.s32 %v790, %v789
    %vm793 = vcmp.lt.s32.totalorder %v791, 16
    %vm794 = vcmp.lt.s32.totalorder %v792, 16
    %v795 = vsub.f32 %v770, %v783
    %v796 = vsub.f32 %v771, %v785
    %v797 = vsel %vm793, %v795, 0.0
    %v798 = vsel %vm794, %v796, 0.0
    %v799 = vadd.f32 %v797, %v798
    %v800 = vrot.slane %v799, 4
    %v801 = vadd.f32 %v799, %v800
    %v802 = vrot.slane %v801, 2
    %v803 = vadd.f32 %v801, %v802
    %v804 = vrot.slane %v803, 1
    %v805 = vadd.f32 %v803, %v804
    %806 = vst [vmem:[#allocation6] sm:$0xff] %v805
    // Predicated region
    $region18: #{tpu_custom_call.1} parent=1 // pred_check
      _
    $region19: #{tpu_custom_call.1} parent=1 // pred_check_branch
      %808 = sbr.rel (0) target = $region21
    $region20: #{tpu_custom_call.1} parent=1 // pred_region
      %s810 = ssub.s32 256, 256
      %811 = vsyncadd [#allocation4], %s810
      %s812 = sshll.u32 [#allocation5], 4
      %s813 = int_to_ptr.vmem [resolvable:$true] %s812
      %818 = dma.vmem_to_hbm [thread:$0]  %s813, 256, %s3, [#allocation4], 128, 128, 8
    $region21: #{tpu_custom_call.1} parent=1 // pred_fallthru
      _
    // Predicated region
    $region22: #{tpu_custom_call.1} parent=1 // pred_check
      _
    $region23: #{tpu_custom_call.1} parent=1 // pred_check_branch
      %820 = sbr.rel (0) target = $region25
    $region24: #{tpu_custom_call.1} parent=1 // pred_region
      %s822 = ssub.s32 128, 128
      %823 = vsyncadd [#allocation7], %s822
      %s825 = sshll.u32 [#allocation6], 4
      %s826 = int_to_ptr.vmem [resolvable:$true] %s825
      %828 = dma.vmem_to_hbm [thread:$0]  %s826, 128, %s4, [#allocation7]
    $region25: #{tpu_custom_call.1} parent=1 // pred_fallthru
      _
    // Predicated region
    $region26: #{tpu_custom_call.1} parent=1 // pred_check
      _
    $region27: #{tpu_custom_call.1} parent=1 // pred_check_branch
      %830 = sbr.rel (0) target = $region29
    $region28: #{tpu_custom_call.1} parent=1 // pred_region
      %831 = dma.done [#allocation4], 256
    $region29: #{tpu_custom_call.1} parent=1 // pred_fallthru
      _
    // Predicated region
    $region30: #{tpu_custom_call.1} parent=1 // pred_check
      _
    $region31: #{tpu_custom_call.1} parent=1 // pred_check_branch
      %833 = sbr.rel (0) target = $region33
    $region32: #{tpu_custom_call.1} parent=1 // pred_region
      %834 = dma.done [#allocation7], 128
    $region33: #{tpu_custom_call.1} parent=1 // pred_fallthru
      _
    %835 = vsyncpa [#allocation3], 1
    %836 = vsyncpa [#allocation4], 1
    %837 = vsyncpa [#allocation7], 1

</llo_original>
